<compile_context>
chip_gen: v6e
topology: v6e:2x2x1
jax: 0.10.0
libtpu: 0.0.40
codegen_flags: <defaults>
</compile_context>

<pallas_src>
import math

import jax
import jax.numpy as jnp
from jax.experimental import pallas as pl
from jax.experimental.pallas import tpu as pltpu

FREQ_EMB_SIZE = 256          # frequency_embedding_size (even -> no zero-pad branch)
HALF = FREQ_EMB_SIZE // 2
MAX_PERIOD = 10000.0


def _round_up(x, m):
    return ((x + m - 1) // m) * m


def _default_silu_in_bf16():
    """bf16 vector path exists on v6e/v7x; keep f32 on v5e and older."""
    try:
        kind = jax.devices()[0].device_kind.lower()
        return not any(v in kind for v in ("v2", "v3", "v4", "v5"))
    except Exception:
        return False


def _make_kernel(silu_in_bf16: bool):
    def timestep_embedder_kernel(t_ref, freqs_ref, w1_ref, b1_ref, w2_ref,
                                 b2_ref, out_ref):
        """Fused: sinusoidal timestep embedding + MLP (Linear, SiLU, Linear)."""
        t = t_ref[...].astype(jnp.float32)            # (tile_n, 1)
        freqs = freqs_ref[...]                        # (1, HALF) f32, precomputed

        args = t * freqs                              # (tile_n, HALF) f32
        # Keep sin/cos in f32 (t can be ~1e3); only the *results* are cast.
        cos_e = jnp.cos(args)
        sin_e = jnp.sin(args)

        # One K=256 bf16 dot.  Both halves are 128-lane aligned, so this
        # concat is just vreg placement (no cross-lane permute).
        emb = jnp.concatenate([cos_e, sin_e], axis=-1).astype(jnp.bfloat16)
        h = jnp.dot(emb, w1_ref[...], preferred_element_type=jnp.float32)
        h = h + b1_ref[...]                           # (tile_n, hidden_p) f32

        if silu_in_bf16:
            hb = h.astype(jnp.bfloat16)
            hb = hb * jax.nn.sigmoid(hb)              # bf16 EUP/VPU (v6e/v7x)
        else:
            h = h * jax.nn.sigmoid(h)                 # f32 path (v5e and older)
            hb = h.astype(jnp.bfloat16)

        out = jnp.dot(hb, w2_ref[...], preferred_element_type=jnp.float32)
        out = out + b2_ref[...]
        out_ref[...] = out.astype(out_ref.dtype)

    return timestep_embedder_kernel


def prepare_params(w1, b1, w2, b2):
    """One-time pad + bf16 cast of the MLP params (hoisted off the call path).

    w1: (256, H), b1: (H,), w2: (H, H), b2: (H,) — all f32, (in, out) layout.
    Zero padding is exact: padded hidden columns of w1/b1 give h = 0,
    SiLU(0) = 0, and padded rows/cols of w2/b2 contribute nothing to the
    real output columns.
    """
    hidden = w1.shape[1]
    hidden_p = _round_up(hidden, 128)

    w1_p = jnp.pad(w1.astype(jnp.bfloat16), ((0, 0), (0, hidden_p - hidden)))
    b1_p = jnp.pad(b1.astype(jnp.float32).reshape(1, hidden),
                   ((0, 0), (0, hidden_p - hidden)))
    w2_p = jnp.pad(w2.astype(jnp.bfloat16),
                   ((0, hidden_p - hidden), (0, hidden_p - hidden)))
    b2_p = jnp.pad(b2.astype(jnp.float32).reshape(1, hidden),
                   ((0, 0), (0, hidden_p - hidden)))

    # freqs = exp(-log(max_period) * arange(half) / half), precomputed once.
    freqs = jnp.exp(-math.log(MAX_PERIOD)
                    * jnp.arange(HALF, dtype=jnp.float32) / HALF).reshape(1, HALF)

    return dict(w1=w1_p, b1=b1_p, w2=w2_p, b2=b2_p, freqs=freqs,
                hidden=hidden, hidden_p=hidden_p)


def timestep_embedder(t, params, *, tile_n=512, out_dtype=jnp.float32,
                      silu_in_bf16=None):
    """t: (N,) float timesteps; params from prepare_params().  Returns (N, H)."""
    if silu_in_bf16 is None:
        silu_in_bf16 = _default_silu_in_bf16()

    n = t.shape[0]
    hidden = params["hidden"]
    hidden_p = params["hidden_p"]
    w1_p, b1_p = params["w1"], params["b1"]
    w2_p, b2_p = params["w2"], params["b2"]
    freqs = params["freqs"]

    # Resident (single-buffered) weight bytes.
    weight_bytes = (w1_p.size * 2 + w2_p.size * 2
                    + (b1_p.size + b2_p.size + freqs.size) * 4)

    def act_bytes(tn):
        # double-buffered out tile (f32) + double-buffered t tile (lane-padded)
        return 2 * tn * hidden_p * 4 + 2 * tn * 512

    # Row-tile selection: sublane-align, fit a conservative VMEM budget,
    # then rebalance so the last tile is nearly full (no 2x padding waste).
    n_p8 = _round_up(n, 8)
    tile_n = max(8, min(_round_up(tile_n, 8), n_p8))
    budget = 40 << 20
    while tile_n > 8 and weight_bytes + act_bytes(tile_n) > budget:
        tile_n = max(8, (tile_n // 2 // 8) * 8)
    num_tiles = -(-n_p8 // tile_n)
    tile_n = _round_up(-(-n_p8 // num_tiles), 8)
    n_p = num_tiles * tile_n

    # Explicit scoped-VMEM limit: resident weights + pipelined tiles + headroom.
    vmem_needed = weight_bytes + act_bytes(tile_n) + (4 << 20)
    vmem_limit = int(min(max(vmem_needed, 32 << 20), 64 << 20))

    t2d = jnp.pad(t.astype(jnp.float32).reshape(n, 1), ((0, n_p - n), (0, 0)))

    kernel = _make_kernel(silu_in_bf16)
    resident = pl.Buffered(1)   # constant index_map -> no double-buffering

    out = pl.pallas_call(
        kernel,
        out_shape=jax.ShapeDtypeStruct((n_p, hidden_p), out_dtype),
        grid_spec=pltpu.PrefetchScalarGridSpec(
            num_scalar_prefetch=0,
            grid=(num_tiles,),
            in_specs=[
                pl.BlockSpec((tile_n, 1), lambda i: (i, 0)),              # t rows
                pl.BlockSpec((1, HALF), lambda i: (0, 0),
                             pipeline_mode=resident),                     # freqs
                pl.BlockSpec((FREQ_EMB_SIZE, hidden_p), lambda i: (0, 0),
                             pipeline_mode=resident),                     # w1
                pl.BlockSpec((1, hidden_p), lambda i: (0, 0),
                             pipeline_mode=resident),                     # b1
                pl.BlockSpec((hidden_p, hidden_p), lambda i: (0, 0),
                             pipeline_mode=resident),                     # w2
                pl.BlockSpec((1, hidden_p), lambda i: (0, 0),
                             pipeline_mode=resident),                     # b2
            ],
            out_specs=pl.BlockSpec((tile_n, hidden_p), lambda i: (i, 0)),
        ),
        compiler_params=pltpu.CompilerParams(
            dimension_semantics=("parallel",),   # shard row tiles across TCs
            vmem_limit_bytes=vmem_limit,
        ),
    )(t2d, freqs, w1_p, b1_p, w2_p, b2_p)

    # TODO(synk): for very small N a hidden-column grid axis (w2/out tiled on
    # columns) would give both v7x TensorCores work; skipped to keep the full
    # first-Linear h reuse without recompute.
    return out[:n, :hidden]


def reference(t, w1, b1, w2, b2):
    """Pure-JAX f32 reference mirroring the PyTorch module."""
    freqs = jnp.exp(-math.log(MAX_PERIOD)
                    * jnp.arange(HALF, dtype=jnp.float32) / HALF)
    args = t[:, None].astype(jnp.float32) * freqs[None]
    emb = jnp.concatenate([jnp.cos(args), jnp.sin(args)], axis=-1)
    h = emb @ w1 + b1
    h = h * jax.nn.sigmoid(h)
    return h @ w2 + b2


if __name__ == "__main__":
    hidden_size = 32
    batch = 2

    key = jax.random.PRNGKey(0)
    k_t, k_w1, k_b1, k_w2, k_b2 = jax.random.split(key, 5)

    # scalar timesteps (may be fractional), one per batch element
    t = jax.random.uniform(k_t, (batch,), jnp.float32, minval=0.0, maxval=1000.0)

    # deterministic synthetic parameters (stored as (in, out))
    w1 = jax.random.normal(k_w1, (FREQ_EMB_SIZE, hidden_size), jnp.float32) * 0.02
    b1 = jax.random.normal(k_b1, (hidden_size,), jnp.float32) * 0.02
    w2 = jax.random.normal(k_w2, (hidden_size, hidden_size), jnp.float32) * 0.02
    b2 = jax.random.normal(k_b2, (hidden_size,), jnp.float32) * 0.02

    params = prepare_params(w1, b1, w2, b2)   # one-time pad + bf16 cast

    out = timestep_embedder(t, params)
    out = jax.block_until_ready(out)

    ref = reference(t, w1, b1, w2, b2)
    assert out.shape == (batch, hidden_size), out.shape
    # Loosened tolerance: weights/activations quantized to bf16 (f32 accumulation).
    assert jnp.allclose(out, ref, atol=1e-2, rtol=1e-2), "mismatch vs reference"

    print("KERNEL_OK")
</pallas_src>

<mosaic_0001>
module attributes {stable_mosaic.version = 11 : i64} {
  func.func @timestep_embedder_kernel(%arg0: i32, %arg1: memref<8x1xf32, #tpu.memory_space<vmem>>, %arg2: memref<1x128xf32, #tpu.memory_space<vmem>>, %arg3: memref<256x128xbf16, #tpu.memory_space<vmem>>, %arg4: memref<1x128xf32, #tpu.memory_space<vmem>>, %arg5: memref<128x128xbf16, #tpu.memory_space<vmem>>, %arg6: memref<1x128xf32, #tpu.memory_space<vmem>>, %arg7: memref<8x128xf32, #tpu.memory_space<vmem>>) attributes {dimension_semantics = [#tpu.dimension_semantics<parallel>], iteration_bounds = array<i64: 1>, scalar_prefetch = 0 : i64, scratch_operands = 0 : i64, tpu.core_type = #tpu.core_type<tc>, window_params = [{transform_indices = @transform_0, window_bounds = array<i64: 8, 1>}, {pipeline_mode = #tpu.pipeline_mode<synchronous>, transform_indices = @transform_1, window_bounds = array<i64: 1, 128>}, {pipeline_mode = #tpu.pipeline_mode<synchronous>, transform_indices = @transform_2, window_bounds = array<i64: 256, 128>}, {pipeline_mode = #tpu.pipeline_mode<synchronous>, transform_indices = @transform_3, window_bounds = array<i64: 1, 128>}, {pipeline_mode = #tpu.pipeline_mode<synchronous>, transform_indices = @transform_4, window_bounds = array<i64: 128, 128>}, {pipeline_mode = #tpu.pipeline_mode<synchronous>, transform_indices = @transform_5, window_bounds = array<i64: 1, 128>}, {transform_indices = @transform_6, window_bounds = array<i64: 8, 128>}]} {
    %c0 = arith.constant 0 : index
    %c0_0 = arith.constant 0 : index
    %0 = vector.load %arg1[%c0, %c0_0] : memref<8x1xf32, #tpu.memory_space<vmem>>, vector<8x1xf32>
    %c0_1 = arith.constant 0 : index
    %c0_2 = arith.constant 0 : index
    %1 = vector.load %arg2[%c0_1, %c0_2] : memref<1x128xf32, #tpu.memory_space<vmem>>, vector<1x128xf32>
    %2 = vector.broadcast %0 : vector<8x1xf32> to vector<8x128xf32>
    %3 = vector.broadcast %1 : vector<1x128xf32> to vector<8x128xf32>
    %4 = arith.mulf %2, %3 : vector<8x128xf32>
    %5 = math.cos %4 : vector<8x128xf32>
    %6 = math.sin %4 : vector<8x128xf32>
    %7 = tpu.concatenate %5, %6 in 1 : vector<8x128xf32>, vector<8x128xf32> -> vector<8x256xf32>
    %8 = arith.truncf %7 : vector<8x256xf32> to vector<8x256xbf16>
    %c0_3 = arith.constant 0 : index
    %c0_4 = arith.constant 0 : index
    %9 = vector.load %arg3[%c0_3, %c0_4] : memref<256x128xbf16, #tpu.memory_space<vmem>>, vector<256x128xbf16>
    %cst = arith.constant dense<0.000000e+00> : vector<8x128xf32>
    %10 = tpu.matmul %8, %9, %cst {dimension_numbers = #tpu.dot_dimension_numbers<[1], [0], [0], [1], [0, 0, 1, 1], [], []>} : vector<8x256xbf16>, vector<256x128xbf16>, vector<8x128xf32> -> vector<8x128xf32>
    %c0_5 = arith.constant 0 : index
    %c0_6 = arith.constant 0 : index
    %11 = vector.load %arg4[%c0_5, %c0_6] : memref<1x128xf32, #tpu.memory_space<vmem>>, vector<1x128xf32>
    %12 = vector.broadcast %11 : vector<1x128xf32> to vector<8x128xf32>
    %13 = arith.addf %10, %12 : vector<8x128xf32>
    %14 = arith.truncf %13 : vector<8x128xf32> to vector<8x128xbf16>
    %15 = arith.negf %14 : vector<8x128xbf16>
    %16 = math.exp %15 : vector<8x128xbf16>
    %cst_7 = arith.constant 1.000000e+00 : bf16
    %17 = vector.broadcast %cst_7 : bf16 to vector<8x128xbf16>
    %18 = arith.addf %17, %16 : vector<8x128xbf16>
    %19 = arith.divf %17, %18 : vector<8x128xbf16>
    %20 = arith.mulf %14, %19 : vector<8x128xbf16>
    %c0_8 = arith.constant 0 : index
    %c0_9 = arith.constant 0 : index
    %21 = vector.load %arg5[%c0_8, %c0_9] : memref<128x128xbf16, #tpu.memory_space<vmem>>, vector<128x128xbf16>
    %cst_10 = arith.constant dense<0.000000e+00> : vector<8x128xf32>
    %22 = tpu.matmul %20, %21, %cst_10 {dimension_numbers = #tpu.dot_dimension_numbers<[1], [0], [0], [1], [0, 0, 1, 1], [], []>} : vector<8x128xbf16>, vector<128x128xbf16>, vector<8x128xf32> -> vector<8x128xf32>
    %c0_11 = arith.constant 0 : index
    %c0_12 = arith.constant 0 : index
    %23 = vector.load %arg6[%c0_11, %c0_12] : memref<1x128xf32, #tpu.memory_space<vmem>>, vector<1x128xf32>
    %24 = vector.broadcast %23 : vector<1x128xf32> to vector<8x128xf32>
    %25 = arith.addf %22, %24 : vector<8x128xf32>
    %c0_13 = arith.constant 0 : index
    %c0_14 = arith.constant 0 : index
    %26 = vector.load %arg7[%c0_13, %c0_14] : memref<8x128xf32, #tpu.memory_space<vmem>>, vector<8x128xf32>
    tpu.vector_store %arg7[%c0_13, %c0_14], %25 {strides = array<i32>} : memref<8x128xf32, #tpu.memory_space<vmem>>, vector<8x128xf32>,
    return
  }
  func.func @transform_0(%arg0: i32) -> (i32, i32) {
    %c0_i32 = arith.constant 0 : i32
    %c0_i32_0 = arith.constant 0 : i32
    return %arg0, %c0_i32 : i32, i32
  }
  func.func @transform_1(%arg0: i32) -> (i32, i32) {
    %c0_i32 = arith.constant 0 : i32
    %c0_i32_0 = arith.constant 0 : i32
    %c0_i32_1 = arith.constant 0 : i32
    return %c0_i32, %c0_i32_0 : i32, i32
  }
  func.func @transform_2(%arg0: i32) -> (i32, i32) {
    %c0_i32 = arith.constant 0 : i32
    %c0_i32_0 = arith.constant 0 : i32
    %c0_i32_1 = arith.constant 0 : i32
    return %c0_i32, %c0_i32_0 : i32, i32
  }
  func.func @transform_3(%arg0: i32) -> (i32, i32) {
    %c0_i32 = arith.constant 0 : i32
    %c0_i32_0 = arith.constant 0 : i32
    %c0_i32_1 = arith.constant 0 : i32
    return %c0_i32, %c0_i32_0 : i32, i32
  }
  func.func @transform_4(%arg0: i32) -> (i32, i32) {
    %c0_i32 = arith.constant 0 : i32
    %c0_i32_0 = arith.constant 0 : i32
    %c0_i32_1 = arith.constant 0 : i32
    return %c0_i32, %c0_i32_0 : i32, i32
  }
  func.func @transform_5(%arg0: i32) -> (i32, i32) {
    %c0_i32 = arith.constant 0 : i32
    %c0_i32_0 = arith.constant 0 : i32
    %c0_i32_1 = arith.constant 0 : i32
    return %c0_i32, %c0_i32_0 : i32, i32
  }
  func.func @transform_6(%arg0: i32) -> (i32, i32) {
    %c0_i32 = arith.constant 0 : i32
    %c0_i32_0 = arith.constant 0 : i32
    return %arg0, %c0_i32 : i32, i32
  }
}

</mosaic_0001>

<llo_original>
// kernel: tpu_custom_call.1
$region0: #{tpu_custom_call.1}
  #allocation0 [shape = 'u32[]', space=smem, size = 0x4, offset = 0x4, fixed_abs, tag = 'smem constant byte address 0x4 - core index']
  #allocation1 [shape = 'u32[144,128]{1,0:T(1,128)}', space=vmem, size = 0x12000, scoped, tag = 'internal scratch']
  %s0 = inlined_call_operand.vmem [shape: f32[8,1], index: 0, kind: input, shape index: {}]
  %s1 = inlined_call_operand.vmem [shape: f32[1,128], index: 1, kind: input, shape index: {}]
  %s2 = inlined_call_operand.hbm [shape: bf16[256,128], index: 2, kind: input, shape index: {}]
  %s3 = inlined_call_operand.vmem [shape: f32[1,128], index: 3, kind: input, shape index: {}]
  %s4 = inlined_call_operand.hbm [shape: bf16[128,128], index: 4, kind: input, shape index: {}]
  %s5 = inlined_call_operand.vmem [shape: f32[1,128], index: 5, kind: input, shape index: {}]
  %s6 = inlined_call_operand.hbm [shape: f32[8,128], index: 6, kind: output, shape index: {}]
  %s7 = sld [smem:[#allocation0]]
  $region42: #{tpu_custom_call.1} parent=0
    _
  %s9 = ssub.s32 1, %s7
  %s10 = scalar_select 0, %s9, %s7
  $region1: #{tpu_custom_call.1} parent=0
    #allocation2 [shape = 'u8[65536]{0}', space=vmem, size = 0x10000, scoped, tag = 'input window, operand 2, single buffered']
    #allocation3 [shape = 's32[1]{0}', space=sflag, size = 0x4, scoped, tag = 'scoped memory for tpu_custom_call.1']
    #allocation4 [shape = 's32[1]{0}', space=sflag, size = 0x4, scoped, tag = 'scoped memory for tpu_custom_call.1']
    #allocation5 [shape = 'u8[32768]{0}', space=vmem, size = 0x8000, scoped, tag = 'input window, operand 4, single buffered']
    #allocation6 [shape = 's32[1]{0}', space=sflag, size = 0x4, scoped, tag = 'scoped memory for tpu_custom_call.1']
    #allocation7 [shape = 'u8[4096]{0}', space=vmem, size = 0x1000, scoped, tag = 'output window, operand 0, single buffered']
    %11 = vsyncpa [#allocation3], 0
    %12 = vsyncpa [#allocation6], 0
    %13 = vsyncpa [#allocation4], 0
    // Predicated region
    $region2: #{tpu_custom_call.1} parent=1 // pred_check
      _
    $region3: #{tpu_custom_call.1} parent=1 // pred_check_branch
      %15 = sbr.rel (0) target = $region5
    $region4: #{tpu_custom_call.1} parent=1 // pred_region
      _
    $region5: #{tpu_custom_call.1} parent=1 // pred_fallthru
      _
    // Predicated region
    $region6: #{tpu_custom_call.1} parent=1 // pred_check
      _
    $region7: #{tpu_custom_call.1} parent=1 // pred_check_branch
      %17 = sbr.rel (0) target = $region9
    $region8: #{tpu_custom_call.1} parent=1 // pred_region
      _
    $region9: #{tpu_custom_call.1} parent=1 // pred_fallthru
      _
    // Predicated region
    $region10: #{tpu_custom_call.1} parent=1 // pred_check
      _
    $region11: #{tpu_custom_call.1} parent=1 // pred_check_branch
      %19 = sbr.rel (0) target = $region13
    $region12: #{tpu_custom_call.1} parent=1 // pred_region
      %s21 = ssub.s32 2048, 2048
      %22 = vsyncadd [#allocation3], %s21
      %s23 = sshll.u32 [#allocation2], 4
      %s24 = int_to_ptr.vmem [resolvable:$true] %s23
      %29 = dma.hbm_to_vmem [thread:$0]  %s2, 2048, %s24, [#allocation3], 64, 64, 4
    $region13: #{tpu_custom_call.1} parent=1 // pred_fallthru
      _
    // Predicated region
    $region14: #{tpu_custom_call.1} parent=1 // pred_check
      _
    $region15: #{tpu_custom_call.1} parent=1 // pred_check_branch
      %31 = sbr.rel (0) target = $region17
    $region16: #{tpu_custom_call.1} parent=1 // pred_region
      _
    $region17: #{tpu_custom_call.1} parent=1 // pred_fallthru
      _
    // Predicated region
    $region18: #{tpu_custom_call.1} parent=1 // pred_check
      _
    $region19: #{tpu_custom_call.1} parent=1 // pred_check_branch
      %33 = sbr.rel (0) target = $region21
    $region20: #{tpu_custom_call.1} parent=1 // pred_region
      %s35 = ssub.s32 1024, 1024
      %36 = vsyncadd [#allocation6], %s35
      %s37 = sshll.u32 [#allocation5], 4
      %s38 = int_to_ptr.vmem [resolvable:$true] %s37
      %43 = dma.hbm_to_vmem [thread:$0]  %s4, 1024, %s38, [#allocation6], 64, 64, 4
    $region21: #{tpu_custom_call.1} parent=1 // pred_fallthru
      _
    // Predicated region
    $region22: #{tpu_custom_call.1} parent=1 // pred_check
      _
    $region23: #{tpu_custom_call.1} parent=1 // pred_check_branch
      %45 = sbr.rel (0) target = $region25
    $region24: #{tpu_custom_call.1} parent=1 // pred_region
      _
    $region25: #{tpu_custom_call.1} parent=1 // pred_fallthru
      _
    // Predicated region
    $region26: #{tpu_custom_call.1} parent=1 // pred_check
      _
    $region27: #{tpu_custom_call.1} parent=1 // pred_check_branch
      %47 = sbr.rel (0) target = $region29
    $region28: #{tpu_custom_call.1} parent=1 // pred_region
      %48 = dma.done [#allocation3], 2048
    $region29: #{tpu_custom_call.1} parent=1 // pred_fallthru
      _
    // Predicated region
    $region30: #{tpu_custom_call.1} parent=1 // pred_check
      _
    $region31: #{tpu_custom_call.1} parent=1 // pred_check_branch
      %50 = sbr.rel (0) target = $region33
    $region32: #{tpu_custom_call.1} parent=1 // pred_region
      %51 = dma.done [#allocation6], 1024
    $region33: #{tpu_custom_call.1} parent=1 // pred_fallthru
      _
    %v54 = vld [vmem:[%s0] sm:$0xff]
    %v55 = vld [vmem:[%s1] sm:$0x1]
    %57 = vset.pattern.permute.xlu0 0
    %58 = vperm.xlu0 %57, %v54
    %v59 = vpop.permute.xlu0 %58
    %v62 = vlaneseq
    %v63 = vshrl.u32 %v62, 7
    %v64 = vsub.s32 0, %v63
    %v65 = vrot.slane %v55, %v64
    %v67 = vmul.f32 %v59, %v65
    %v68 = vand.u32 2147483647, %v67
    %vm69 = vcmp.le.f32.partialorder %v68, 0.7853982
    %vm70 = vcmp.lt.s32.totalorder %v67, 0
    %v71 = vand.u32 %v67, 2139095040
    %v72 = vshrl.u32 %v71, 23
    %v73 = vsub.s32 %v72, 127
    %v74 = vand.u32 2147483647, %v67
    %v75 = vand.u32 %v74, 8388607
    %v76 = vor.u32 %v75, 8388608
    %v77 = vsub.s32 0, %v76
    %v78 = vadd.s32 %v73, 1
    %vm79 = vcmp.gt.s32.totalorder %v78, 0
    %v80 = vsel %vm79, %v78, 0
    %v81 = vshrl.u32 %v80, 5
    %v82 = vand.u32 %v80, 31
    %v83 = vsub.s32 32, %v82
    %v84 = vshrl.u32 683565275, %v83
    %v85 = vshll.u32 683565275, %v82
    %v86 = vshrl.u32 2475754826, %v83
    %v87 = vor.u32 %v85, %v86
    %v88 = vshll.u32 2475754826, %v82
    %v89 = vshrl.u32 2131351028, %v83
    %v90 = vor.u32 %v88, %v89
    %v91 = vshll.u32 2131351028, %v82
    %v92 = vshrl.u32 2102212464, %v83
    %v93 = vor.u32 %v91, %v92
    %v94 = vshll.u32 2102212464, %v82
    %v95 = vshrl.u32 920167782, %v83
    %v96 = vor.u32 %v94, %v95
    %v97 = vshll.u32 920167782, %v82
    %v98 = vshrl.u32 1326507024, %v83
    %v99 = vor.u32 %v97, %v98
    %vm100 = vcmp.lt.s32.totalorder %v81, 1
    %vm101 = vcmp.lt.s32.totalorder %v81, 2
    %vm102 = vcmp.lt.s32.totalorder %v81, 3
    %vm103 = vcmp.lt.s32.totalorder %v81, 4
    %v104 = vsel %vm100, %v84, %v87
    %v105 = vsel %vm103, %v93, 2102212464
    %v106 = vsel %vm102, %v90, %v105
    %v107 = vsel %vm101, %v104, %v106
    %v108 = vsel %vm100, %v87, %v90
    %v109 = vsel %vm103, %v96, 920167782
    %v110 = vsel %vm102, %v93, %v109
    %v111 = vsel %vm101, %v108, %v110
    %v112 = vsel %vm100, %v90, %v93
    %v113 = vsel %vm103, %v99, 1326507024
    %v114 = vsel %vm102, %v96, %v113
    %v115 = vsel %vm101, %v112, %v114
    %v116 = vshll.u32 %v76, 8
    %v117 = vmul.u32.u64.compose %v116, %v115
    %v118 = vextract.low.u32 %v117
    %v119 = vextract.high.u32 %v117
    %v120 = vmul.u32.u64.compose %v116, %v111
    %v121 = vextract.low.u32 %v120
    %v122 = vextract.high.u32 %v120
    %v123 = vmul.u32 %v116, %v107
    %v124 = vadd.s32 %v119, %v121
    %vm125 = vc.u32 %v119, %v121
    %v126 = vadd.s32 %v122, 1
    %v127 = vsel %vm125, %v126, %v122
    %v128 = vadd.s32 %v123, %v127
    %v129 = vadd.s32 %v128, 536870912
    %v130 = vshrl.u32 %v129, 30
    %v131 = vshll.u32 %v130, 30
    %v132 = vsub.s32 %v128, %v131
    %vm133 = vcmp.lt.s32.totalorder %v132, 0
    %v134 = vsub.s32 0, %v132
    %v135 = vsel %vm133, %v134, %v132
    %v136 = vclz %v135
    %v137 = vsub.s32 %v136, 2
    %vm138 = vcmp.gt.s32.totalorder 0, %v137
    %v139 = vsel %vm138, 0, %v137
    %v140 = vsub.s32 32, %v139
    %v141 = vshll.u32 %v132, %v139
    %v142 = vshrl.u32 %v124, %v140
    %v143 = vor.u32 %v141, %v142
    %v144 = vsub.s32 4294967266, %v139
    %v145 = vadd.s32 %v144, 127
    %v146 = vshll.u32 %v145, 23
    %v147 = vor.u32 4788187, %v146
    %v148 = vand.u32 2147483647, %v147
    %v150 = vcvt.s32.f32 %v143
    %v151 = vmul.f32 %v150, %v148
    %v152 = vxor.u32 %v151, 2147483648
    %v153 = vsel %vm70, %v152, %v151
    %v154 = vsub.s32 4, %v130
    %v155 = vsel %vm70, %v154, %v130
    %v156 = vsel %vm69, %v67, %v153
    %v157 = vsel %vm69, 0, %v155
    %v158 = vcosq.f32.pop %v156
    %v159 = vsinq.f32.pop %v156
    %vm160 = vweird.f32 %v67
    %v161 = vand.u32 %v157, 3
    %vm162 = vcmp.lt.s32.totalorder %v161, 2
    %vm163 = vcmp.eq.s32.totalorder %v161, 0
    %v164 = vxor.u32 %v159, 2147483648
    %v165 = vsel %vm163, %v158, %v164
    %vm166 = vcmp.eq.s32.totalorder %v161, 2
    %v167 = vxor.u32 %v158, 2147483648
    %v168 = vsel %vm166, %v167, %v159
    %v169 = vsel %vm162, %v165, %v168
    %v170 = vsel %vm160, nan, %v169
    %v171 = vand.u32 2147483647, %v67
    %vm172 = vcmp.le.f32.partialorder %v171, 0.7853982
    %vm173 = vcmp.lt.s32.totalorder %v67, 0
    %v174 = vand.u32 %v67, 2139095040
    %v175 = vshrl.u32 %v174, 23
    %v176 = vsub.s32 %v175, 127
    %v177 = vand.u32 2147483647, %v67
    %v178 = vand.u32 %v177, 8388607
    %v179 = vor.u32 %v178, 8388608
    %v180 = vsub.s32 0, %v179
    %v181 = vadd.s32 %v176, 1
    %vm182 = vcmp.gt.s32.totalorder %v181, 0
    %v183 = vsel %vm182, %v181, 0
    %v184 = vshrl.u32 %v183, 5
    %v185 = vand.u32 %v183, 31
    %v186 = vsub.s32 32, %v185
    %v187 = vshrl.u32 683565275, %v186
    %v188 = vshll.u32 683565275, %v185
    %v189 = vshrl.u32 2475754826, %v186
    %v190 = vor.u32 %v188, %v189
    %v191 = vshll.u32 2475754826, %v185
    %v192 = vshrl.u32 2131351028, %v186
    %v193 = vor.u32 %v191, %v192
    %v194 = vshll.u32 2131351028, %v185
    %v195 = vshrl.u32 2102212464, %v186
    %v196 = vor.u32 %v194, %v195
    %v197 = vshll.u32 2102212464, %v185
    %v198 = vshrl.u32 920167782, %v186
    %v199 = vor.u32 %v197, %v198
    %v200 = vshll.u32 920167782, %v185
    %v201 = vshrl.u32 1326507024, %v186
    %v202 = vor.u32 %v200, %v201
    %vm203 = vcmp.lt.s32.totalorder %v184, 1
    %vm204 = vcmp.lt.s32.totalorder %v184, 2
    %vm205 = vcmp.lt.s32.totalorder %v184, 3
    %vm206 = vcmp.lt.s32.totalorder %v184, 4
    %v207 = vsel %vm203, %v187, %v190
    %v208 = vsel %vm206, %v196, 2102212464
    %v209 = vsel %vm205, %v193, %v208
    %v210 = vsel %vm204, %v207, %v209
    %v211 = vsel %vm203, %v190, %v193
    %v212 = vsel %vm206, %v199, 920167782
    %v213 = vsel %vm205, %v196, %v212
    %v214 = vsel %vm204, %v211, %v213
    %v215 = vsel %vm203, %v193, %v196
    %v216 = vsel %vm206, %v202, 1326507024
    %v217 = vsel %vm205, %v199, %v216
    %v218 = vsel %vm204, %v215, %v217
    %v219 = vshll.u32 %v179, 8
    %v220 = vmul.u32.u64.compose %v219, %v218
    %v221 = vextract.low.u32 %v220
    %v222 = vextract.high.u32 %v220
    %v223 = vmul.u32.u64.compose %v219, %v214
    %v224 = vextract.low.u32 %v223
    %v225 = vextract.high.u32 %v223
    %v226 = vmul.u32 %v219, %v210
    %v227 = vadd.s32 %v222, %v224
    %vm228 = vc.u32 %v222, %v224
    %v229 = vadd.s32 %v225, 1
    %v230 = vsel %vm228, %v229, %v225
    %v231 = vadd.s32 %v226, %v230
    %v232 = vadd.s32 %v231, 536870912
    %v233 = vshrl.u32 %v232, 30
    %v234 = vshll.u32 %v233, 30
    %v235 = vsub.s32 %v231, %v234
    %vm236 = vcmp.lt.s32.totalorder %v235, 0
    %v237 = vsub.s32 0, %v235
    %v238 = vsel %vm236, %v237, %v235
    %v239 = vclz %v238
    %v240 = vsub.s32 %v239, 2
    %vm241 = vcmp.gt.s32.totalorder 0, %v240
    %v242 = vsel %vm241, 0, %v240
    %v243 = vsub.s32 32, %v242
    %v244 = vshll.u32 %v235, %v242
    %v245 = vshrl.u32 %v227, %v243
    %v246 = vor.u32 %v244, %v245
    %v247 = vsub.s32 4294967266, %v242
    %v248 = vadd.s32 %v247, 127
    %v249 = vshll.u32 %v248, 23
    %v250 = vor.u32 4788187, %v249
    %v251 = vand.u32 2147483647, %v250
    %v253 = vcvt.s32.f32 %v246
    %v254 = vmul.f32 %v253, %v251
    %v255 = vxor.u32 %v254, 2147483648
    %v256 = vsel %vm173, %v255, %v254
    %v257 = vsub.s32 4, %v233
    %v258 = vsel %vm173, %v257, %v233
    %v259 = vsel %vm172, %v67, %v256
    %v260 = vsel %vm172, 0, %v258
    %v261 = vcosq.f32.pop %v259
    %v262 = vsinq.f32.pop %v259
    %vm263 = vweird.f32 %v67
    %v264 = vadd.s32 %v260, 3
    %v265 = vand.u32 %v264, 3
    %vm266 = vcmp.lt.s32.totalorder %v265, 2
    %vm267 = vcmp.eq.s32.totalorder %v265, 0
    %v268 = vxor.u32 %v262, 2147483648
    %v269 = vsel %vm267, %v261, %v268
    %vm270 = vcmp.eq.s32.totalorder %v265, 2
    %v271 = vxor.u32 %v261, 2147483648
    %v272 = vsel %vm270, %v271, %v262
    %v273 = vsel %vm266, %v269, %v272
    %v274 = vsel %vm263, nan, %v273
    %v275 = vpack.c.bf16 %v170, %v170
    %v276 = vpack.c.bf16 %v274, %v274
    %v277 = vld [vmem:[#allocation2] sm:$0xf]
    %v278 = vld [vmem:[#allocation2 + $0x4] sm:$0xf]
    %v279 = vld [vmem:[#allocation2 + $0x8] sm:$0xf]
    %v280 = vld [vmem:[#allocation2 + $0xc] sm:$0xf]
    %v281 = vld [vmem:[#allocation2 + $0x10] sm:$0xf]
    %v282 = vld [vmem:[#allocation2 + $0x14] sm:$0xf]
    %v283 = vld [vmem:[#allocation2 + $0x18] sm:$0xf]
    %v284 = vld [vmem:[#allocation2 + $0x1c] sm:$0xf]
    %v285 = vld [vmem:[#allocation2 + $0x20] sm:$0xf]
    %v286 = vld [vmem:[#allocation2 + $0x24] sm:$0xf]
    %v287 = vld [vmem:[#allocation2 + $0x28] sm:$0xf]
    %v288 = vld [vmem:[#allocation2 + $0x2c] sm:$0xf]
    %v289 = vld [vmem:[#allocation2 + $0x30] sm:$0xf]
    %v290 = vld [vmem:[#allocation2 + $0x34] sm:$0xf]
    %v291 = vld [vmem:[#allocation2 + $0x38] sm:$0xf]
    %v292 = vld [vmem:[#allocation2 + $0x3c] sm:$0xf]
    %v293 = vld [vmem:[#allocation2 + $0x40] sm:$0xf]
    %v294 = vld [vmem:[#allocation2 + $0x44] sm:$0xf]
    %v295 = vld [vmem:[#allocation2 + $0x48] sm:$0xf]
    %v296 = vld [vmem:[#allocation2 + $0x4c] sm:$0xf]
    %v297 = vld [vmem:[#allocation2 + $0x50] sm:$0xf]
    %v298 = vld [vmem:[#allocation2 + $0x54] sm:$0xf]
    %v299 = vld [vmem:[#allocation2 + $0x58] sm:$0xf]
    %v300 = vld [vmem:[#allocation2 + $0x5c] sm:$0xf]
    %v301 = vld [vmem:[#allocation2 + $0x60] sm:$0xf]
    %v302 = vld [vmem:[#allocation2 + $0x64] sm:$0xf]
    %v303 = vld [vmem:[#allocation2 + $0x68] sm:$0xf]
    %v304 = vld [vmem:[#allocation2 + $0x6c] sm:$0xf]
    %v305 = vld [vmem:[#allocation2 + $0x70] sm:$0xf]
    %v306 = vld [vmem:[#allocation2 + $0x74] sm:$0xf]
    %v307 = vld [vmem:[#allocation2 + $0x78] sm:$0xf]
    %v308 = vld [vmem:[#allocation2 + $0x7c] sm:$0xf]
    %v309 = vld [vmem:[%s3] sm:$0x1]
    %v311 = vlaneseq
    %v312 = vshrl.u32 %v311, 7
    %v313 = vsub.s32 0, %v312
    %v314 = vrot.slane %v309, %v313
    %v348 = vunpack.c.l.b16 %v277
    %v349 = vunpack.c.l.b16 %v278
    %v350 = vunpack.c.l.b16 %v279
    %v351 = vunpack.c.l.b16 %v280
    %v352 = vunpack.c.l.b16 %v281
    %v353 = vunpack.c.l.b16 %v282
    %v354 = vunpack.c.l.b16 %v283
    %v355 = vunpack.c.l.b16 %v284
    %v356 = vunpack.c.l.b16 %v285
    %v357 = vunpack.c.l.b16 %v286
    %v358 = vunpack.c.l.b16 %v287
    %v359 = vunpack.c.l.b16 %v288
    %v360 = vunpack.c.l.b16 %v289
    %v361 = vunpack.c.l.b16 %v290
    %v362 = vunpack.c.l.b16 %v291
    %v363 = vunpack.c.l.b16 %v292
    %v364 = vunpack.c.l.b16 %v293
    %v365 = vunpack.c.l.b16 %v294
    %v366 = vunpack.c.l.b16 %v295
    %v367 = vunpack.c.l.b16 %v296
    %v368 = vunpack.c.l.b16 %v297
    %v369 = vunpack.c.l.b16 %v298
    %v370 = vunpack.c.l.b16 %v299
    %v371 = vunpack.c.l.b16 %v300
    %v372 = vunpack.c.l.b16 %v301
    %v373 = vunpack.c.l.b16 %v302
    %v374 = vunpack.c.l.b16 %v303
    %v375 = vunpack.c.l.b16 %v304
    %v376 = vunpack.c.l.b16 %v305
    %v377 = vunpack.c.l.b16 %v306
    %v378 = vunpack.c.l.b16 %v307
    %v379 = vunpack.c.l.b16 %v308
    %v380 = vpack.c.b16 %v349, %v348
    %v381 = vpack.c.b16 %v351, %v350
    %v382 = vpack.c.b16 %v353, %v352
    %v383 = vpack.c.b16 %v355, %v354
    %v384 = vpack.c.b16 %v357, %v356
    %v385 = vpack.c.b16 %v359, %v358
    %v386 = vpack.c.b16 %v361, %v360
    %v387 = vpack.c.b16 %v363, %v362
    %v388 = vpack.c.b16 %v365, %v364
    %v389 = vpack.c.b16 %v367, %v366
    %v390 = vpack.c.b16 %v369, %v368
    %v391 = vpack.c.b16 %v371, %v370
    %v392 = vpack.c.b16 %v373, %v372
    %v393 = vpack.c.b16 %v375, %v374
    %v394 = vpack.c.b16 %v377, %v376
    %v395 = vpack.c.b16 %v379, %v378
    %412 = vmatprep.subr.bf16.mxu0 0
    %413 = vmatpush1.bf16.msra.mxu0 %v387
    %414 = vmatprep.subr.bf16.mxu0 0
    %415 = vmatpush1.bf16.msra.mxu0 %v386
    %416 = vmatprep.subr.bf16.mxu0 0
    %417 = vmatpush1.bf16.msra.mxu0 %v385
    %418 = vmatprep.subr.bf16.mxu0 0
    %419 = vmatpush1.bf16.msra.mxu0 %v384
    %420 = vmatprep.subr.bf16.mxu0 0
    %421 = vmatpush1.bf16.msra.mxu0 %v383
    %422 = vmatprep.subr.bf16.mxu0 0
    %423 = vmatpush1.bf16.msra.mxu0 %v382
    %424 = vmatprep.subr.bf16.mxu0 0
    %425 = vmatpush1.bf16.msra.mxu0 %v381
    %426 = vmatprep.subr.bf16.mxu0 0
    %427 = vmatpush1.bf16.msra.mxu0 %v380
    %428 = vmatprep.subr.bf16.mxu0 0
    %429 = vmatpush2.bf16.msra.mxu0 %v395
    %430 = vmatprep.subr.bf16.mxu0 0
    %431 = vmatpush2.bf16.msra.mxu0 %v394
    %432 = vmatprep.subr.bf16.mxu0 0
    %433 = vmatpush2.bf16.msra.mxu0 %v393
    %434 = vmatprep.subr.bf16.mxu0 0
    %435 = vmatpush2.bf16.msra.mxu0 %v392
    %436 = vmatprep.subr.bf16.mxu0 0
    %437 = vmatpush2.bf16.msra.mxu0 %v391
    %438 = vmatprep.subr.bf16.mxu0 0
    %439 = vmatpush2.bf16.msra.mxu0 %v390
    %440 = vmatprep.subr.bf16.mxu0 0
    %441 = vmatpush2.bf16.msra.mxu0 %v389
    %442 = vmatprep.subr.bf16.mxu0 0
    %443 = vmatpush2.bf16.msra.mxu0 %v388
    %444 = vmatprep.mubr.bf16.mxu0 %v276
    %445 = vmatmul.mubr.bf16.gmra.mxu0 %v275
    %v446 = vpop.f32.mrf.mxu0
    %v447 = vadd.f32 %v314, %v446
    %v448 = vpop.f32.mrf.mxu0
    %v449 = vpop.f32.mrf.mxu0
    %v450 = vpop.f32.mrf.mxu0
    %451 = vdwg.mxu0
    %v452 = vpack.c.bf16 %v447, %v447
    %v453 = vxor.u32 %v452, 2147516416
    %v455 = vmul.bf16 %v453, 1069105081
    %v456 = vpow.bf16.pop %v455
    %v457 = vadd.bf16 %v456, 1065369472
    %v458 = vrcp.bf16.pop %v457
    %v459 = vmul.bf16 1065369472, %v458
    %v460 = vmul.bf16 %v452, %v459
    %v461 = vld [vmem:[#allocation5] sm:$0xf]
    %v462 = vld [vmem:[#allocation5 + $0x4] sm:$0xf]
    %v463 = vld [vmem:[#allocation5 + $0x8] sm:$0xf]
    %v464 = vld [vmem:[#allocation5 + $0xc] sm:$0xf]
    %v465 = vld [vmem:[#allocation5 + $0x10] sm:$0xf]
    %v466 = vld [vmem:[#allocation5 + $0x14] sm:$0xf]
    %v467 = vld [vmem:[#allocation5 + $0x18] sm:$0xf]
    %v468 = vld [vmem:[#allocation5 + $0x1c] sm:$0xf]
    %v469 = vld [vmem:[#allocation5 + $0x20] sm:$0xf]
    %v470 = vld [vmem:[#allocation5 + $0x24] sm:$0xf]
    %v471 = vld [vmem:[#allocation5 + $0x28] sm:$0xf]
    %v472 = vld [vmem:[#allocation5 + $0x2c] sm:$0xf]
    %v473 = vld [vmem:[#allocation5 + $0x30] sm:$0xf]
    %v474 = vld [vmem:[#allocation5 + $0x34] sm:$0xf]
    %v475 = vld [vmem:[#allocation5 + $0x38] sm:$0xf]
    %v476 = vld [vmem:[#allocation5 + $0x3c] sm:$0xf]
    %v477 = vld [vmem:[%s5] sm:$0x1]
    %v479 = vlaneseq
    %v480 = vshrl.u32 %v479, 7
    %v481 = vsub.s32 0, %v480
    %v482 = vrot.slane %v477, %v481
    %v500 = vunpack.c.l.b16 %v461
    %v501 = vunpack.c.l.b16 %v462
    %v502 = vunpack.c.l.b16 %v463
    %v503 = vunpack.c.l.b16 %v464
    %v504 = vunpack.c.l.b16 %v465
    %v505 = vunpack.c.l.b16 %v466
    %v506 = vunpack.c.l.b16 %v467
    %v507 = vunpack.c.l.b16 %v468
    %v508 = vunpack.c.l.b16 %v469
    %v509 = vunpack.c.l.b16 %v470
    %v510 = vunpack.c.l.b16 %v471
    %v511 = vunpack.c.l.b16 %v472
    %v512 = vunpack.c.l.b16 %v473
    %v513 = vunpack.c.l.b16 %v474
    %v514 = vunpack.c.l.b16 %v475
    %v515 = vunpack.c.l.b16 %v476
    %v516 = vpack.c.b16 %v501, %v500
    %v517 = vpack.c.b16 %v503, %v502
    %v518 = vpack.c.b16 %v505, %v504
    %v519 = vpack.c.b16 %v507, %v506
    %v520 = vpack.c.b16 %v509, %v508
    %v521 = vpack.c.b16 %v511, %v510
    %v522 = vpack.c.b16 %v513, %v512
    %v523 = vpack.c.b16 %v515, %v514
    %532 = vmatprep.subr.bf16.mxu0 0
    %533 = vmatpush1.bf16.msra.mxu0 %v523
    %534 = vmatprep.subr.bf16.mxu0 0
    %535 = vmatpush1.bf16.msra.mxu0 %v522
    %536 = vmatprep.subr.bf16.mxu0 0
    %537 = vmatpush1.bf16.msra.mxu0 %v521
    %538 = vmatprep.subr.bf16.mxu0 0
    %539 = vmatpush1.bf16.msra.mxu0 %v520
    %540 = vmatprep.subr.bf16.mxu0 0
    %541 = vmatpush1.bf16.msra.mxu0 %v519
    %542 = vmatprep.subr.bf16.mxu0 0
    %543 = vmatpush1.bf16.msra.mxu0 %v518
    %544 = vmatprep.subr.bf16.mxu0 0
    %545 = vmatpush1.bf16.msra.mxu0 %v517
    %546 = vmatprep.subr.bf16.mxu0 0
    %547 = vmatpush1.bf16.msra.mxu0 %v516
    %548 = vmatprep.subr.bf16.mxu0 0
    %549 = vmatpush2.bf16.msra.mxu0 0
    %550 = vmatprep.subr.bf16.mxu0 0
    %551 = vmatpush2.bf16.msra.mxu0 0
    %552 = vmatprep.subr.bf16.mxu0 0
    %553 = vmatpush2.bf16.msra.mxu0 0
    %554 = vmatprep.subr.bf16.mxu0 0
    %555 = vmatpush2.bf16.msra.mxu0 0
    %556 = vmatprep.subr.bf16.mxu0 0
    %557 = vmatpush2.bf16.msra.mxu0 0
    %558 = vmatprep.subr.bf16.mxu0 0
    %559 = vmatpush2.bf16.msra.mxu0 0
    %560 = vmatprep.subr.bf16.mxu0 0
    %561 = vmatpush2.bf16.msra.mxu0 0
    %562 = vmatprep.subr.bf16.mxu0 0
    %563 = vmatpush2.bf16.msra.mxu0 0
    %564 = vmatprep.mubr.bf16.mxu0 0
    %565 = vmatmul.mubr.bf16.gmra.mxu0 %v460
    %v566 = vpop.f32.mrf.mxu0
    %v567 = vadd.f32 %v482, %v566
    %v568 = vpop.f32.mrf.mxu0
    %v569 = vpop.f32.mrf.mxu0
    %v570 = vpop.f32.mrf.mxu0
    %571 = vdwg.mxu0
    %572 = vst [vmem:[#allocation7] sm:$0xff] %v567
    // Predicated region
    $region34: #{tpu_custom_call.1} parent=1 // pred_check
      _
    $region35: #{tpu_custom_call.1} parent=1 // pred_check_branch
      %574 = sbr.rel (0) target = $region37
    $region36: #{tpu_custom_call.1} parent=1 // pred_region
      %s576 = ssub.s32 128, 128
      %577 = vsyncadd [#allocation4], %s576
      %s579 = sshll.u32 [#allocation7], 4
      %s580 = int_to_ptr.vmem [resolvable:$true] %s579
      %582 = dma.vmem_to_hbm [thread:$0]  %s580, 128, %s6, [#allocation4]
    $region37: #{tpu_custom_call.1} parent=1 // pred_fallthru
      _
    // Predicated region
    $region38: #{tpu_custom_call.1} parent=1 // pred_check
      _
    $region39: #{tpu_custom_call.1} parent=1 // pred_check_branch
      %584 = sbr.rel (0) target = $region41
    $region40: #{tpu_custom_call.1} parent=1 // pred_region
      %585 = dma.done [#allocation4], 128
    $region41: #{tpu_custom_call.1} parent=1 // pred_fallthru
      _
    %586 = vsyncpa [#allocation3], 1
    %587 = vsyncpa [#allocation6], 1
    %588 = vsyncpa [#allocation4], 1

</llo_original>
